<compile_context>
chip_gen: v7x
topology: tpu7x:2x2x1
jax: 0.10.0
libtpu: 0.0.40
codegen_flags: <defaults>
</compile_context>

<pallas_src>
import jax
import jax.numpy as jnp
from jax.experimental import pallas as pl
from jax.experimental.pallas import tpu as pltpu

_LANE = 128
_SUB = 8


def _make_focal_kernel(*, R, R_total, n_j_per_half, has_mask, need_row_mask, acc_rows):
    """Kernel body for one static configuration."""

    def kernel(*refs):
        if has_mask:
            pred_ref, gt_ref, mask_ref, out_ref, acc_loss, acc_pos = refs
        else:
            pred_ref, gt_ref, out_ref, acc_loss, acc_pos = refs

        j = pl.program_id(2)

        @pl.when(j == 0)
        def _init():
            acc_loss[...] = jnp.zeros_like(acc_loss)
            acc_pos[...] = jnp.zeros_like(acc_pos)

        pred = pred_ref[...].astype(jnp.float32)        # (bb, C, R, 128)
        gt = gt_ref[...].astype(jnp.float32)
        m = mask_ref[...].astype(jnp.float32) if has_mask else None   # (bb, 1, R, 128)

        if need_row_mask:
            # Rows past R_total (ragged last block, or a clamped duplicate block on
            # the second megacore half) hold unspecified data.  Sanitize BEFORE the
            # log so garbage can never produce NaN/Inf: pred = gt = 0 makes the
            # focal term and the positive indicator exactly zero.
            start = (pl.program_id(1) * n_j_per_half + j) * R
            row = jax.lax.broadcasted_iota(jnp.int32, (1, 1, R, _LANE), 2)
            valid = (row + start) < R_total
            pred = jnp.where(valid, pred, 0.0)
            gt = jnp.where(valid, gt, 0.0)
            if has_mask:
                m = jnp.where(valid, m, 0.0)

        pos = gt == 1.0
        one_m_pred = 1.0 - pred
        neg_w = jnp.square(jnp.square(1.0 - gt))         # (1 - gt)^4  (== 0 at gt == 1)
        w_pos = jnp.square(one_m_pred)                   # (1 - pred)^2
        # Relies on gt <= 1 (CenterNet Gaussian targets): (1-gt)^4 vanishes exactly
        # at gt == 1, so the reference's explicit (gt < 1) gate is redundant.
        w_neg = jnp.square(pred) * neg_w
        # One EUP log per element: log(pred) on positives, log(1-pred) on negatives.
        x = jnp.where(pos, pred, one_m_pred)
        w = jnp.where(pos, w_pos, w_neg)
        term = jnp.log(x) * w
        if has_mask:
            term = term * m                              # (bb,1,R,128) bcast over C
            posm = jnp.where(pos, m, 0.0)
        else:
            posm = pos.astype(jnp.float32)

        # Collapse the tile to a single-vreg partial: leading (batch, channel) axes
        # with pure VPU vreg adds; the row axis in groups of 8 (still VPU) when
        # possible, otherwise one tiny sublane reduce (only for R not multiple of 8).
        t_l = jnp.sum(term, axis=(0, 1))                 # (R, 128)
        t_p = jnp.sum(posm, axis=(0, 1))
        if acc_rows == _SUB:
            upd_l = jnp.sum(t_l.reshape(R // _SUB, _SUB, _LANE), axis=0)
            upd_p = jnp.sum(t_p.reshape(R // _SUB, _SUB, _LANE), axis=0)
        else:
            upd_l = jnp.sum(t_l, axis=0, keepdims=True)  # (1, 128)
            upd_p = jnp.sum(t_p, axis=0, keepdims=True)
        acc_loss[...] += upd_l
        acc_pos[...] += upd_p

        @pl.when(j == pl.num_programs(2) - 1)
        def _finalize():
            out_ref[0, 0, 0, :, :] = acc_loss[...]
            out_ref[0, 0, 1, :, :] = acc_pos[...]

    return kernel


def focal_loss_centernet(pred, gt, mask=None, *, tile_rows=None, batch_block=None,
                         target_elems=512 * 1024):
    """JAX/Pallas equivalent of FocalLossCenterNet.forward(out, target, mask)."""
    B, C, H, W = pred.shape
    assert gt.shape == (B, C, H, W)
    HW = H * W
    R_total = pl.cdiv(HW, _LANE)
    has_mask = mask is not None
    if has_mask:
        assert mask.shape == (B, H, W)

    # ---- layout: (B, C, R_total, 128); mask de-duplicated as (B, 1, R_total, 128).
    # Free reshape when HW % 128 == 0; otherwise one zero-pad pass (padded elements
    # contribute exactly zero loss and zero num_pos, so no runtime masking needed).
    pred3 = pred.reshape(B, C, HW)
    gt3 = gt.reshape(B, C, HW)
    mask3 = mask.reshape(B, 1, HW) if has_mask else None   # native dtype, no upcast
    pad = R_total * _LANE - HW
    if pad:
        pred3 = jnp.pad(pred3, ((0, 0), (0, 0), (0, pad)))
        gt3 = jnp.pad(gt3, ((0, 0), (0, 0), (0, pad)))
        if has_mask:
            mask3 = jnp.pad(mask3, ((0, 0), (0, 0), (0, pad)))
    pred4 = pred3.reshape(B, C, R_total, _LANE)
    gt4 = gt3.reshape(B, C, R_total, _LANE)
    mask4 = mask3.reshape(B, 1, R_total, _LANE) if has_mask else None

    # ---- tiling: ~target_elems per pred/gt block (multi-MiB HBM per grid step),
    # rows a multiple of 8; small per-batch heads fold several batches per step.
    per_batch_elems = C * R_total * _LANE
    if tile_rows is None:
        if per_batch_elems >= target_elems:
            bb = 1
            R = max(_SUB, (target_elems // (C * _LANE)) // _SUB * _SUB)
            R = min(R, R_total)
        else:
            R = R_total
            bb = 1
            for d in range(B, 0, -1):
                if B % d == 0 and d * per_batch_elems <= target_elems:
                    bb = d
                    break
    else:
        R = int(tile_rows)
        assert R == R_total or (R % _SUB == 0 and 0 < R <= R_total), (
            "tile_rows must equal HW//128 (rounded up) or be a multiple of 8")
        bb = 1
    if batch_block is not None:
        bb = int(batch_block)
    assert B % bb == 0, "batch_block must divide the batch size"

    Bb = B // bb
    n_j_total = pl.cdiv(R_total, R)
    NH = 2 if n_j_total >= 2 else 1          # megacore split over row-blocks (v7x)
    n_j = pl.cdiv(n_j_total, NH)
    need_row_mask = (NH * n_j * R) != R_total
    acc_rows = _SUB if R % _SUB == 0 else 1

    def blk_idx(b, h, j):
        # Clamp the (possibly out-of-range) block on the second half; its
        # contribution is zeroed in-kernel by the row-validity mask.
        jj = jnp.minimum(h * n_j + j, n_j_total - 1)
        return (b, 0, jj, 0)

    inputs = [pred4, gt4]
    in_specs = [pl.BlockSpec((bb, C, R, _LANE), blk_idx),
                pl.BlockSpec((bb, C, R, _LANE), blk_idx)]
    if has_mask:
        inputs.append(mask4)
        in_specs.append(pl.BlockSpec((bb, 1, R, _LANE), blk_idx))

    kernel = _make_focal_kernel(R=R, R_total=R_total, n_j_per_half=n_j,
                                has_mask=has_mask, need_row_mask=need_row_mask,
                                acc_rows=acc_rows)

    # Explicit VMEM budget: double-buffered streams + tiny output/accumulators,
    # floored at the usual scoped default and capped for v7x's 64 MiB physical VMEM.
    blk_bytes = bb * C * R * _LANE * (pred4.dtype.itemsize + gt4.dtype.itemsize)
    if has_mask:
        blk_bytes += bb * R * _LANE * mask4.dtype.itemsize
    vmem_needed = 2 * blk_bytes + 6 * (2 * acc_rows * _LANE * 4)
    vmem_limit = int(min(48 * 2**20, max(32 * 2**20, int(vmem_needed * 1.5))))

    partials = pl.pallas_call(
        kernel,
        out_shape=jax.ShapeDtypeStruct((Bb, NH, 2, acc_rows, _LANE), jnp.float32),
        grid=(Bb, NH, n_j),
        in_specs=in_specs,
        out_specs=pl.BlockSpec((1, 1, 2, acc_rows, _LANE),
                               lambda b, h, j: (b, h, 0, 0, 0)),
        scratch_shapes=[pltpu.VMEM((acc_rows, _LANE), jnp.float32),   # loss partial
                        pltpu.VMEM((acc_rows, _LANE), jnp.float32)],  # num_pos partial
        compiler_params=pltpu.CompilerParams(
            dimension_semantics=("parallel", "parallel", "arbitrary"),
            vmem_limit_bytes=vmem_limit),
    )(*inputs)

    loss_sum = jnp.sum(partials[:, :, 0])      # sum(pos_loss) + sum(neg_loss)
    num_pos = jnp.sum(partials[:, :, 1])
    # The positive-term sum is exactly 0 whenever num_pos == 0, so this reproduces
    # the reference's `-neg_loss` branch exactly.
    return -loss_sum / jnp.where(num_pos == 0.0, 1.0, num_pos)


def _reference_loss(pred, gt, mask=None):
    """Pure-JAX mirror of neg_loss_cornernet (for validation)."""
    pred = pred.astype(jnp.float32)
    gt = gt.astype(jnp.float32)
    pos_inds = (gt == 1.0).astype(jnp.float32)
    neg_inds = (gt < 1.0).astype(jnp.float32)
    neg_weights = (1.0 - gt) ** 4
    pos_loss = jnp.log(pred) * (1.0 - pred) ** 2 * pos_inds
    neg_loss = jnp.log(1.0 - pred) * pred ** 2 * neg_weights * neg_inds
    if mask is not None:
        m = mask.astype(jnp.float32)[:, None, :, :]
        pos_loss = pos_loss * m
        neg_loss = neg_loss * m
        num_pos = jnp.sum(pos_inds * m)
    else:
        num_pos = jnp.sum(pos_inds)
    pos_loss = jnp.sum(pos_loss)
    neg_loss = jnp.sum(neg_loss)
    return jnp.where(num_pos == 0, -neg_loss,
                     -(pos_loss + neg_loss) / jnp.where(num_pos == 0, 1.0, num_pos))


if __name__ == "__main__":
    key = jax.random.PRNGKey(0)
    k1, k2, k3 = jax.random.split(key, 3)

    def make_inputs(B, C, H, W, dtype=jnp.float32):
        pred = jax.nn.sigmoid(jax.random.normal(k1, (B, C, H, W), jnp.float32))
        gt = jax.random.uniform(k2, (B, C, H, W), jnp.float32, minval=0.0, maxval=0.95)
        gt = gt.at[:, :, H // 4, W // 4].set(1.0)
        gt = gt.at[:, :, (2 * H) // 3, W // 2].set(1.0)
        mask = (jax.random.uniform(k3, (B, H, W), jnp.float32) > 0.3).astype(jnp.float32)
        return pred.astype(dtype), gt.astype(dtype), mask

    def check(name, out, ref, rtol=1e-4):
        assert jnp.allclose(out, ref, rtol=rtol, atol=1e-5), (name, out, ref)

    # 1) f32 + mask, small CenterNet head (C=4, 16x16): batch folding, single tile.
    pred, gt, mask = make_inputs(2, 4, 16, 16)
    out = jax.block_until_ready(focal_loss_centernet(pred, gt, mask))
    check("masked", out, _reference_loss(pred, gt, mask))

    # 2) Without mask (mask stream dropped entirely).
    out = jax.block_until_ready(focal_loss_centernet(pred, gt, None))
    check("nomask", out, _reference_loss(pred, gt, None))

    # 3) bf16 heatmaps streamed at native width (no wrapper upcast; f32 math in-kernel).
    pred_bf, gt_bf, mask_b = make_inputs(2, 4, 16, 16, dtype=jnp.bfloat16)
    out = jax.block_until_ready(focal_loss_centernet(pred_bf, gt_bf, mask_b))
    check("bf16", out, _reference_loss(pred_bf, gt_bf, mask_b), rtol=1e-3)

    # 4) Multi-tile rows + megacore halves + clamped/ragged row blocks:
    #    HW=5120 -> R_total=40, tile_rows=16 -> 3 row blocks split over 2 halves.
    pred, gt, mask = make_inputs(1, 2, 64, 80)
    out = jax.block_until_ready(focal_loss_centernet(pred, gt, mask, tile_rows=16))
    check("halves", out, _reference_loss(pred, gt, mask))

    # 5) H*W not a multiple of 128 (lane-pad path) + batch folding, C=3.
    pred, gt, mask = make_inputs(2, 3, 16, 15)
    out = jax.block_until_ready(focal_loss_centernet(pred, gt, mask))
    check("laneragged", out, _reference_loss(pred, gt, mask))

    print("KERNEL_OK")
</pallas_src>

<mosaic_0001>
module attributes {stable_mosaic.version = 11 : i64} {
  func.func @kernel(%arg0: i32, %arg1: i32, %arg2: i32, %arg3: memref<2x4x2x128xf32, #tpu.memory_space<vmem>>, %arg4: memref<2x4x2x128xf32, #tpu.memory_space<vmem>>, %arg5: memref<2x1x2x128xf32, #tpu.memory_space<vmem>>, %arg6: memref<1x1x2x1x128xf32, #tpu.memory_space<vmem>>, %arg7: memref<1x128xf32, #tpu.memory_space<vmem>>, %arg8: memref<1x128xf32, #tpu.memory_space<vmem>>) attributes {dimension_semantics = [#tpu.dimension_semantics<parallel>, #tpu.dimension_semantics<parallel>, #tpu.dimension_semantics<arbitrary>], iteration_bounds = array<i64: 1, 1, 1>, scalar_prefetch = 0 : i64, scratch_operands = 2 : i64, tpu.core_type = #tpu.core_type<tc>, window_params = [{transform_indices = @transform_0, window_bounds = array<i64: 2, 4, 2, 128>}, {transform_indices = @transform_1, window_bounds = array<i64: 2, 4, 2, 128>}, {transform_indices = @transform_2, window_bounds = array<i64: 2, 1, 2, 128>}, {transform_indices = @transform_3, window_bounds = array<i64: 1, 1, 2, 1, 128>}]} {
    %c0_i32 = arith.constant 0 : i32
    %0 = arith.cmpi eq, %arg2, %c0_i32 : i32
    %1 = arith.extui %0 : i1 to i32
    %c0_i32_0 = arith.constant 0 : i32
    %2 = arith.cmpi ne, %1, %c0_i32_0 : i32
    scf.if %2 {
      %cst_29 = arith.constant 0.000000e+00 : f32
      %42 = vector.broadcast %cst_29 : f32 to vector<1x128xf32>
      %c0_30 = arith.constant 0 : index
      %c0_31 = arith.constant 0 : index
      %43 = vector.load %arg7[%c0_30, %c0_31] : memref<1x128xf32, #tpu.memory_space<vmem>>, vector<1x128xf32>
      tpu.vector_store %arg7[%c0_30, %c0_31], %42 {strides = array<i32>} : memref<1x128xf32, #tpu.memory_space<vmem>>, vector<1x128xf32>,
      %cst_32 = arith.constant 0.000000e+00 : f32
      %44 = vector.broadcast %cst_32 : f32 to vector<1x128xf32>
      %c0_33 = arith.constant 0 : index
      %c0_34 = arith.constant 0 : index
      %45 = vector.load %arg8[%c0_33, %c0_34] : memref<1x128xf32, #tpu.memory_space<vmem>>, vector<1x128xf32>
      tpu.vector_store %arg8[%c0_33, %c0_34], %44 {strides = array<i32>} : memref<1x128xf32, #tpu.memory_space<vmem>>, vector<1x128xf32>,
    } else {
    }
    %c0 = arith.constant 0 : index
    %c0_1 = arith.constant 0 : index
    %c0_2 = arith.constant 0 : index
    %c0_3 = arith.constant 0 : index
    %3 = vector.load %arg3[%c0, %c0_1, %c0_2, %c0_3] : memref<2x4x2x128xf32, #tpu.memory_space<vmem>>, vector<2x4x2x128xf32>
    %c0_4 = arith.constant 0 : index
    %c0_5 = arith.constant 0 : index
    %c0_6 = arith.constant 0 : index
    %c0_7 = arith.constant 0 : index
    %4 = vector.load %arg4[%c0_4, %c0_5, %c0_6, %c0_7] : memref<2x4x2x128xf32, #tpu.memory_space<vmem>>, vector<2x4x2x128xf32>
    %c0_8 = arith.constant 0 : index
    %c0_9 = arith.constant 0 : index
    %c0_10 = arith.constant 0 : index
    %c0_11 = arith.constant 0 : index
    %5 = vector.load %arg5[%c0_8, %c0_9, %c0_10, %c0_11] : memref<2x1x2x128xf32, #tpu.memory_space<vmem>>, vector<2x1x2x128xf32>
    %cst = arith.constant 1.000000e+00 : f32
    %6 = vector.broadcast %cst : f32 to vector<2x4x2x128xf32>
    %7 = arith.cmpf oeq, %4, %6 : vector<2x4x2x128xf32>
    %cst_12 = arith.constant 1.000000e+00 : f32
    %8 = vector.broadcast %cst_12 : f32 to vector<2x4x2x128xf32>
    %9 = arith.subf %8, %3 : vector<2x4x2x128xf32>
    %cst_13 = arith.constant 1.000000e+00 : f32
    %10 = vector.broadcast %cst_13 : f32 to vector<2x4x2x128xf32>
    %11 = arith.subf %10, %4 : vector<2x4x2x128xf32>
    %12 = arith.mulf %11, %11 : vector<2x4x2x128xf32>
    %13 = arith.mulf %12, %12 : vector<2x4x2x128xf32>
    %14 = arith.mulf %9, %9 : vector<2x4x2x128xf32>
    %15 = arith.mulf %3, %3 : vector<2x4x2x128xf32>
    %16 = arith.mulf %15, %13 : vector<2x4x2x128xf32>
    %17 = arith.select %7, %3, %9 : vector<2x4x2x128xi1>, vector<2x4x2x128xf32>
    %18 = arith.select %7, %14, %16 : vector<2x4x2x128xi1>, vector<2x4x2x128xf32>
    %19 = math.log %17 : vector<2x4x2x128xf32>
    %20 = arith.mulf %19, %18 : vector<2x4x2x128xf32>
    %21 = vector.broadcast %5 : vector<2x1x2x128xf32> to vector<2x4x2x128xf32>
    %22 = arith.mulf %20, %21 : vector<2x4x2x128xf32>
    %cst_14 = arith.constant 0.000000e+00 : f32
    %23 = vector.shape_cast %5 : vector<2x1x2x128xf32> to vector<2x1x2x128xf32>
    %24 = vector.broadcast %23 : vector<2x1x2x128xf32> to vector<2x4x2x128xf32>
    %25 = vector.broadcast %cst_14 : f32 to vector<2x4x2x128xf32>
    %26 = arith.select %7, %24, %25 : vector<2x4x2x128xi1>, vector<2x4x2x128xf32>
    %cst_15 = arith.constant dense<0.000000e+00> : vector<2x128xf32>
    %27 = vector.multi_reduction <add>, %22, %cst_15 [0, 1] : vector<2x4x2x128xf32> to vector<2x128xf32>
    %cst_16 = arith.constant dense<0.000000e+00> : vector<2x128xf32>
    %28 = vector.multi_reduction <add>, %26, %cst_16 [0, 1] : vector<2x4x2x128xf32> to vector<2x128xf32>
    %cst_17 = arith.constant dense<0.000000e+00> : vector<128xf32>
    %29 = vector.multi_reduction <add>, %27, %cst_17 [0] : vector<2x128xf32> to vector<128xf32>
    %30 = vector.shape_cast %29 : vector<128xf32> to vector<1x128xf32>
    %cst_18 = arith.constant dense<0.000000e+00> : vector<128xf32>
    %31 = vector.multi_reduction <add>, %28, %cst_18 [0] : vector<2x128xf32> to vector<128xf32>
    %32 = vector.shape_cast %31 : vector<128xf32> to vector<1x128xf32>
    %c0_19 = arith.constant 0 : index
    %c0_20 = arith.constant 0 : index
    %33 = vector.load %arg7[%c0_19, %c0_20] : memref<1x128xf32, #tpu.memory_space<vmem>>, vector<1x128xf32>
    %34 = arith.addf %33, %30 : vector<1x128xf32>
    %c0_21 = arith.constant 0 : index
    %c0_22 = arith.constant 0 : index
    %35 = vector.load %arg7[%c0_21, %c0_22] : memref<1x128xf32, #tpu.memory_space<vmem>>, vector<1x128xf32>
    tpu.vector_store %arg7[%c0_21, %c0_22], %34 {strides = array<i32>} : memref<1x128xf32, #tpu.memory_space<vmem>>, vector<1x128xf32>,
    %c0_23 = arith.constant 0 : index
    %c0_24 = arith.constant 0 : index
    %36 = vector.load %arg8[%c0_23, %c0_24] : memref<1x128xf32, #tpu.memory_space<vmem>>, vector<1x128xf32>
    %37 = arith.addf %36, %32 : vector<1x128xf32>
    %c0_25 = arith.constant 0 : index
    %c0_26 = arith.constant 0 : index
    %38 = vector.load %arg8[%c0_25, %c0_26] : memref<1x128xf32, #tpu.memory_space<vmem>>, vector<1x128xf32>
    tpu.vector_store %arg8[%c0_25, %c0_26], %37 {strides = array<i32>} : memref<1x128xf32, #tpu.memory_space<vmem>>, vector<1x128xf32>,
    %c0_i32_27 = arith.constant 0 : i32
    %39 = arith.cmpi eq, %arg2, %c0_i32_27 : i32
    %40 = arith.extui %39 : i1 to i32
    %c0_i32_28 = arith.constant 0 : i32
    %41 = arith.cmpi ne, %40, %c0_i32_28 : i32
    scf.if %41 {
      %c0_29 = arith.constant 0 : index
      %c0_30 = arith.constant 0 : index
      %42 = vector.load %arg7[%c0_29, %c0_30] : memref<1x128xf32, #tpu.memory_space<vmem>>, vector<1x128xf32>
      %c0_31 = arith.constant 0 : index
      %c0_32 = arith.constant 0 : index
      %c0_33 = arith.constant 0 : index
      %c0_34 = arith.constant 0 : index
      %c0_35 = arith.constant 0 : index
      %43 = vector.load %arg6[%c0_31, %c0_32, %c0_33, %c0_34, %c0_35] : memref<1x1x2x1x128xf32, #tpu.memory_space<vmem>>, vector<1x1x1x1x128xf32>
      %44 = vector.shape_cast %43 : vector<1x1x1x1x128xf32> to vector<1x128xf32>
      %45 = vector.shape_cast %42 : vector<1x128xf32> to vector<1x1x1x1x128xf32>
      tpu.vector_store %arg6[%c0_31, %c0_32, %c0_33, %c0_34, %c0_35], %45 {strides = array<i32>} : memref<1x1x2x1x128xf32, #tpu.memory_space<vmem>>, vector<1x1x1x1x128xf32>,
      %c0_36 = arith.constant 0 : index
      %c0_37 = arith.constant 0 : index
      %46 = vector.load %arg8[%c0_36, %c0_37] : memref<1x128xf32, #tpu.memory_space<vmem>>, vector<1x128xf32>
      %c0_38 = arith.constant 0 : index
      %c0_39 = arith.constant 0 : index
      %c1 = arith.constant 1 : index
      %c0_40 = arith.constant 0 : index
      %c0_41 = arith.constant 0 : index
      %47 = vector.load %arg6[%c0_38, %c0_39, %c1, %c0_40, %c0_41] : memref<1x1x2x1x128xf32, #tpu.memory_space<vmem>>, vector<1x1x1x1x128xf32>
      %48 = vector.shape_cast %47 : vector<1x1x1x1x128xf32> to vector<1x128xf32>
      %49 = vector.shape_cast %46 : vector<1x128xf32> to vector<1x1x1x1x128xf32>
      tpu.vector_store %arg6[%c0_38, %c0_39, %c1, %c0_40, %c0_41], %49 {strides = array<i32>} : memref<1x1x2x1x128xf32, #tpu.memory_space<vmem>>, vector<1x1x1x1x128xf32>,
    } else {
    }
    return
  }
  func.func @transform_0(%arg0: i32, %arg1: i32, %arg2: i32) -> (i32, i32, i32, i32) {
    %c1_i32 = arith.constant 1 : i32
    %0 = arith.muli %arg1, %c1_i32 : i32
    %1 = arith.addi %0, %arg2 : i32
    %c0_i32 = arith.constant 0 : i32
    %2 = arith.minsi %1, %c0_i32 : i32
    %c0_i32_0 = arith.constant 0 : i32
    %c0_i32_1 = arith.constant 0 : i32
    %c0_i32_2 = arith.constant 0 : i32
    return %arg0, %c0_i32_0, %2, %c0_i32_1 : i32, i32, i32, i32
  }
  func.func @transform_1(%arg0: i32, %arg1: i32, %arg2: i32) -> (i32, i32, i32, i32) {
    %c1_i32 = arith.constant 1 : i32
    %0 = arith.muli %arg1, %c1_i32 : i32
    %1 = arith.addi %0, %arg2 : i32
    %c0_i32 = arith.constant 0 : i32
    %2 = arith.minsi %1, %c0_i32 : i32
    %c0_i32_0 = arith.constant 0 : i32
    %c0_i32_1 = arith.constant 0 : i32
    %c0_i32_2 = arith.constant 0 : i32
    return %arg0, %c0_i32_0, %2, %c0_i32_1 : i32, i32, i32, i32
  }
  func.func @transform_2(%arg0: i32, %arg1: i32, %arg2: i32) -> (i32, i32, i32, i32) {
    %c1_i32 = arith.constant 1 : i32
    %0 = arith.muli %arg1, %c1_i32 : i32
    %1 = arith.addi %0, %arg2 : i32
    %c0_i32 = arith.constant 0 : i32
    %2 = arith.minsi %1, %c0_i32 : i32
    %c0_i32_0 = arith.constant 0 : i32
    %c0_i32_1 = arith.constant 0 : i32
    %c0_i32_2 = arith.constant 0 : i32
    return %arg0, %c0_i32_0, %2, %c0_i32_1 : i32, i32, i32, i32
  }
  func.func @transform_3(%arg0: i32, %arg1: i32, %arg2: i32) -> (i32, i32, i32, i32, i32) {
    %c0_i32 = arith.constant 0 : i32
    %c0_i32_0 = arith.constant 0 : i32
    %c0_i32_1 = arith.constant 0 : i32
    %c0_i32_2 = arith.constant 0 : i32
    return %arg0, %arg1, %c0_i32, %c0_i32_0, %c0_i32_1 : i32, i32, i32, i32, i32
  }
}

</mosaic_0001>

<llo_original>
// kernel: tpu_custom_call.1
$region0: #{tpu_custom_call.1}
  #allocation0 [shape = 'u32[]', space=smem, size = 0x4, offset = 0x4, fixed_abs, tag = 'smem constant byte address 0x4 - core index']
  #allocation1 [shape = 'u32[144,128]{1,0:T(1,128)}', space=vmem, size = 0x12000, scoped, tag = 'internal scratch']
  #allocation2 [shape = 'f32[1,128]{1,0:T(1,128)}', space=vmem, size = 0x200, scoped, tag = 'scratch operand']
  #allocation3 [shape = 'f32[1,128]{1,0:T(1,128)}', space=vmem, size = 0x200, scoped, tag = 'scratch operand']
  %s0 = inlined_call_operand.hbm [shape: f32[2,4,2,128], index: 0, kind: input, shape index: {}]
  %s1 = inlined_call_operand.hbm [shape: f32[2,4,2,128], index: 1, kind: input, shape index: {}]
  %s2 = inlined_call_operand.vmem [shape: f32[2,1,2,128], index: 2, kind: input, shape index: {}]
  %s3 = inlined_call_operand.hbm [shape: f32[1,1,2,1,128], index: 3, kind: output, shape index: {}]
  %s4 = sld [smem:[#allocation0]]
  $region38: #{tpu_custom_call.1} parent=0
    _
  %s6 = ssub.s32 1, %s4
  %s7 = scalar_select 0, %s6, %s4
  $region1: #{tpu_custom_call.1} parent=0
    #allocation4 [shape = 'u8[8192]{0}', space=vmem, size = 0x2000, scoped, tag = 'input window, operand 0, single buffered']
    #allocation5 [shape = 's32[1]{0}', space=sflag, size = 0x4, scoped, tag = 'scoped memory for tpu_custom_call.1']
    #allocation6 [shape = 's32[1]{0}', space=sflag, size = 0x4, scoped, tag = 'scoped memory for tpu_custom_call.1']
    #allocation7 [shape = 'u8[8192]{0}', space=vmem, size = 0x2000, scoped, tag = 'input window, operand 1, single buffered']
    #allocation8 [shape = 's32[1]{0}', space=sflag, size = 0x4, scoped, tag = 'scoped memory for tpu_custom_call.1']
    #allocation9 [shape = 'u8[1024]{0}', space=vmem, size = 0x400, scoped, tag = 'output window, operand 0, single buffered']
    %8 = vsyncpa [#allocation5], 0
    %9 = vsyncpa [#allocation8], 0
    %10 = vsyncpa [#allocation6], 0
    // Predicated region
    $region2: #{tpu_custom_call.1} parent=1 // pred_check
      _
    $region3: #{tpu_custom_call.1} parent=1 // pred_check_branch
      %12 = sbr.rel (0) target = $region5
    $region4: #{tpu_custom_call.1} parent=1 // pred_region
      %s13 = sadd.s32 0, 0
      %p14 = scmp.lt.s32.totalorder %s13, 0
      %s15 = scalar_select %p14, %s13, 0
      %s17 = ssub.s32 256, 256
      %18 = vsyncadd [#allocation5], %s17
      %s19 = smul.addr %s15, 32
      %s20 = scalar_lea.hbm %s0, %s19
      %s21 = sshll.u32 [#allocation4], 4
      %s22 = int_to_ptr.vmem [resolvable:$true] %s21
      %27 = dma.hbm_to_vmem [thread:$0]  %s20, 256, %s22, [#allocation5], 32, 32, 2
    $region5: #{tpu_custom_call.1} parent=1 // pred_fallthru
      _
    // Predicated region
    $region6: #{tpu_custom_call.1} parent=1 // pred_check
      _
    $region7: #{tpu_custom_call.1} parent=1 // pred_check_branch
      %29 = sbr.rel (0) target = $region9
    $region8: #{tpu_custom_call.1} parent=1 // pred_region
      %s30 = sadd.s32 0, 0
      %p31 = scmp.lt.s32.totalorder %s30, 0
      %s32 = scalar_select %p31, %s30, 0
      %s34 = ssub.s32 256, 256
      %35 = vsyncadd [#allocation8], %s34
      %s36 = smul.addr %s32, 32
      %s37 = scalar_lea.hbm %s1, %s36
      %s38 = sshll.u32 [#allocation7], 4
      %s39 = int_to_ptr.vmem [resolvable:$true] %s38
      %44 = dma.hbm_to_vmem [thread:$0]  %s37, 256, %s39, [#allocation8], 32, 32, 2
    $region9: #{tpu_custom_call.1} parent=1 // pred_fallthru
      _
    // Predicated region
    $region10: #{tpu_custom_call.1} parent=1 // pred_check
      _
    $region11: #{tpu_custom_call.1} parent=1 // pred_check_branch
      %46 = sbr.rel (0) target = $region13
    $region12: #{tpu_custom_call.1} parent=1 // pred_region
      %s47 = sadd.s32 0, 0
      %p48 = scmp.lt.s32.totalorder %s47, 0
      %s49 = scalar_select %p48, %s47, 0
      %p50 = scmp.lt.s32.totalorder %s49, 0
      %s51 = scalar_select %p50, %s49, 0
      %s52 = smul.addr %s51, 2
      %s53 = scalar_lea.vmem %s2, %s52
      %s54 = sadd.s32 0, 0
      %p55 = scmp.lt.s32.totalorder %s54, 0
      %s56 = scalar_select %p55, %s54, 0
    $region13: #{tpu_custom_call.1} parent=1 // pred_fallthru
      _
    // Predicated region
    $region14: #{tpu_custom_call.1} parent=1 // pred_check
      _
    $region15: #{tpu_custom_call.1} parent=1 // pred_check_branch
      %58 = sbr.rel (0) target = $region17
    $region16: #{tpu_custom_call.1} parent=1 // pred_region
      %59 = dma.done [#allocation5], 256
    $region17: #{tpu_custom_call.1} parent=1 // pred_fallthru
      _
    // Predicated region
    $region18: #{tpu_custom_call.1} parent=1 // pred_check
      _
    $region19: #{tpu_custom_call.1} parent=1 // pred_check_branch
      %61 = sbr.rel (0) target = $region21
    $region20: #{tpu_custom_call.1} parent=1 // pred_region
      %62 = dma.done [#allocation8], 256
    $region21: #{tpu_custom_call.1} parent=1 // pred_fallthru
      _
    %s63 = sadd.s32 0, 0
    %p64 = scmp.lt.s32.totalorder %s63, 0
    %s65 = scalar_select %p64, %s63, 0
    %p66 = scmp.lt.s32.totalorder %s65, 0
    %s67 = scalar_select %p66, %s65, 0
    %s68 = smul.addr %s67, 2
    %s69 = scalar_lea.vmem %s2, %s68
    %s70 = sadd.s32 0, 0
    %p71 = scmp.lt.s32.totalorder %s70, 0
    %s72 = scalar_select %p71, %s70, 0
    %s73 = sadd.s32 0, 0
    %p74 = scmp.lt.s32.totalorder %s73, 0
    %s75 = scalar_select %p74, %s73, 0
    %s76 = sadd.s32 0, 0
    %p77 = scmp.lt.s32.totalorder %s76, 0
    %s78 = scalar_select %p77, %s76, 0
    %p79 = scmp.lt.s32.totalorder %s78, 0
    %s80 = scalar_select %p79, %s78, 0
    %s81 = smul.addr %s80, 2
    %s82 = scalar_lea.vmem %s2, %s81
    %s83 = sadd.s32 0, 0
    %p84 = scmp.lt.s32.totalorder %s83, 0
    %s85 = scalar_select %p84, %s83, 0
    %p86 = scmp.eq.s32.totalorder 0, 0
    // Predicated region
    $region22: #{tpu_custom_call.1} parent=1 // pred_check
      %p87 = pneg %p86
    $region23: #{tpu_custom_call.1} parent=1 // pred_check_branch
      %89 = sbr.rel (%p87) target = $region25
    $region24: #{tpu_custom_call.1} parent=1 // pred_region
      %90 = vst [vmem:[#allocation2] sm:$0x1] 0.0
      %91 = vst [vmem:[#allocation3] sm:$0x1] 0.0
    $region25: #{tpu_custom_call.1} parent=1 // pred_fallthru
      _
    %v92 = vld [vmem:[#allocation4] sm:$0x3]
    %v93 = vld [vmem:[#allocation4 + $0x2] sm:$0x3]
    %v94 = vld [vmem:[#allocation4 + $0x4] sm:$0x3]
    %v95 = vld [vmem:[#allocation4 + $0x6] sm:$0x3]
    %v96 = vld [vmem:[#allocation4 + $0x8] sm:$0x3]
    %v97 = vld [vmem:[#allocation4 + $0xa] sm:$0x3]
    %v98 = vld [vmem:[#allocation4 + $0xc] sm:$0x3]
    %v99 = vld [vmem:[#allocation4 + $0xe] sm:$0x3]
    %v100 = vld [vmem:[#allocation7] sm:$0x3]
    %v101 = vld [vmem:[#allocation7 + $0x2] sm:$0x3]
    %v102 = vld [vmem:[#allocation7 + $0x4] sm:$0x3]
    %v103 = vld [vmem:[#allocation7 + $0x6] sm:$0x3]
    %v104 = vld [vmem:[#allocation7 + $0x8] sm:$0x3]
    %v105 = vld [vmem:[#allocation7 + $0xa] sm:$0x3]
    %v106 = vld [vmem:[#allocation7 + $0xc] sm:$0x3]
    %v107 = vld [vmem:[#allocation7 + $0xe] sm:$0x3]
    %v108 = vld [vmem:[%s82] sm:$0x3]
    %v109 = vld [vmem:[%s82 + $0x2] sm:$0x3]
    %vm110 = vcmp.eq.f32.partialorder %v100, 1.0
    %vm111 = vcmp.eq.f32.partialorder %v101, 1.0
    %vm112 = vcmp.eq.f32.partialorder %v102, 1.0
    %vm113 = vcmp.eq.f32.partialorder %v103, 1.0
    %vm114 = vcmp.eq.f32.partialorder %v104, 1.0
    %vm115 = vcmp.eq.f32.partialorder %v105, 1.0
    %vm116 = vcmp.eq.f32.partialorder %v106, 1.0
    %vm117 = vcmp.eq.f32.partialorder %v107, 1.0
    %v118 = vsub.f32 1.0, %v92
    %v119 = vsub.f32 1.0, %v93
    %v120 = vsub.f32 1.0, %v94
    %v121 = vsub.f32 1.0, %v95
    %v122 = vsub.f32 1.0, %v96
    %v123 = vsub.f32 1.0, %v97
    %v124 = vsub.f32 1.0, %v98
    %v125 = vsub.f32 1.0, %v99
    %v126 = vsub.f32 1.0, %v100
    %v127 = vsub.f32 1.0, %v101
    %v128 = vsub.f32 1.0, %v102
    %v129 = vsub.f32 1.0, %v103
    %v130 = vsub.f32 1.0, %v104
    %v131 = vsub.f32 1.0, %v105
    %v132 = vsub.f32 1.0, %v106
    %v133 = vsub.f32 1.0, %v107
    %v134 = vmul.f32 %v126, %v126
    %v135 = vmul.f32 %v127, %v127
    %v136 = vmul.f32 %v128, %v128
    %v137 = vmul.f32 %v129, %v129
    %v138 = vmul.f32 %v130, %v130
    %v139 = vmul.f32 %v131, %v131
    %v140 = vmul.f32 %v132, %v132
    %v141 = vmul.f32 %v133, %v133
    %v142 = vmul.f32 %v134, %v134
    %v143 = vmul.f32 %v135, %v135
    %v144 = vmul.f32 %v136, %v136
    %v145 = vmul.f32 %v137, %v137
    %v146 = vmul.f32 %v138, %v138
    %v147 = vmul.f32 %v139, %v139
    %v148 = vmul.f32 %v140, %v140
    %v149 = vmul.f32 %v141, %v141
    %v150 = vmul.f32 %v118, %v118
    %v151 = vmul.f32 %v119, %v119
    %v152 = vmul.f32 %v120, %v120
    %v153 = vmul.f32 %v121, %v121
    %v154 = vmul.f32 %v122, %v122
    %v155 = vmul.f32 %v123, %v123
    %v156 = vmul.f32 %v124, %v124
    %v157 = vmul.f32 %v125, %v125
    %v158 = vmul.f32 %v92, %v92
    %v159 = vmul.f32 %v93, %v93
    %v160 = vmul.f32 %v94, %v94
    %v161 = vmul.f32 %v95, %v95
    %v162 = vmul.f32 %v96, %v96
    %v163 = vmul.f32 %v97, %v97
    %v164 = vmul.f32 %v98, %v98
    %v165 = vmul.f32 %v99, %v99
    %v166 = vmul.f32 %v158, %v142
    %v167 = vmul.f32 %v159, %v143
    %v168 = vmul.f32 %v160, %v144
    %v169 = vmul.f32 %v161, %v145
    %v170 = vmul.f32 %v162, %v146
    %v171 = vmul.f32 %v163, %v147
    %v172 = vmul.f32 %v164, %v148
    %v173 = vmul.f32 %v165, %v149
    %v174 = vsel %vm110, %v92, %v118
    %v175 = vsel %vm111, %v93, %v119
    %v176 = vsel %vm112, %v94, %v120
    %v177 = vsel %vm113, %v95, %v121
    %v178 = vsel %vm114, %v96, %v122
    %v179 = vsel %vm115, %v97, %v123
    %v180 = vsel %vm116, %v98, %v124
    %v181 = vsel %vm117, %v99, %v125
    %v182 = vsel %vm110, %v150, %v166
    %v183 = vsel %vm111, %v151, %v167
    %v184 = vsel %vm112, %v152, %v168
    %v185 = vsel %vm113, %v153, %v169
    %v186 = vsel %vm114, %v154, %v170
    %v187 = vsel %vm115, %v155, %v171
    %v188 = vsel %vm116, %v156, %v172
    %v189 = vsel %vm117, %v157, %v173
    %v190 = vlog2.pop %v174
    %v191 = vmul.f32 %v190, 0.6931472
    %v192 = vlog2.pop %v175
    %v193 = vmul.f32 %v192, 0.6931472
    %v194 = vlog2.pop %v176
    %v195 = vmul.f32 %v194, 0.6931472
    %v196 = vlog2.pop %v177
    %v197 = vmul.f32 %v196, 0.6931472
    %v198 = vlog2.pop %v178
    %v199 = vmul.f32 %v198, 0.6931472
    %v200 = vlog2.pop %v179
    %v201 = vmul.f32 %v200, 0.6931472
    %v202 = vlog2.pop %v180
    %v203 = vmul.f32 %v202, 0.6931472
    %v204 = vlog2.pop %v181
    %v205 = vmul.f32 %v204, 0.6931472
    %v206 = vmul.f32 %v191, %v182
    %v207 = vmul.f32 %v193, %v183
    %v208 = vmul.f32 %v195, %v184
    %v209 = vmul.f32 %v197, %v185
    %v210 = vmul.f32 %v199, %v186
    %v211 = vmul.f32 %v201, %v187
    %v212 = vmul.f32 %v203, %v188
    %v213 = vmul.f32 %v205, %v189
    %v214 = vmul.f32 %v206, %v108
    %v215 = vmul.f32 %v207, %v108
    %v216 = vmul.f32 %v208, %v108
    %v217 = vmul.f32 %v209, %v108
    %v218 = vmul.f32 %v210, %v109
    %v219 = vmul.f32 %v211, %v109
    %v220 = vmul.f32 %v212, %v109
    %v221 = vmul.f32 %v213, %v109
    %v222 = vsel %vm110, %v108, 0.0
    %v223 = vsel %vm111, %v108, 0.0
    %v224 = vsel %vm112, %v108, 0.0
    %v225 = vsel %vm113, %v108, 0.0
    %v226 = vsel %vm114, %v109, 0.0
    %v227 = vsel %vm115, %v109, 0.0
    %v228 = vsel %vm116, %v109, 0.0
    %v229 = vsel %vm117, %v109, 0.0
    %vm230 = vcmask 1041408
    %v231 = vsel %vm230, %v214, 0.0
    %v232 = vsel %vm230, %v215, 0.0
    %v233 = vadd.f32 %v231, %v232
    %v234 = vsel %vm230, %v216, 0.0
    %v235 = vadd.f32 %v233, %v234
    %v236 = vsel %vm230, %v217, 0.0
    %v237 = vadd.f32 %v235, %v236
    %v238 = vsel %vm230, %v218, 0.0
    %v239 = vadd.f32 %v237, %v238
    %v240 = vsel %vm230, %v219, 0.0
    %v241 = vadd.f32 %v239, %v240
    %v242 = vsel %vm230, %v220, 0.0
    %v243 = vadd.f32 %v241, %v242
    %v244 = vsel %vm230, %v221, 0.0
    %v245 = vadd.f32 %v243, %v244
    %v246 = vsel %vm230, %v222, 0.0
    %v247 = vsel %vm230, %v223, 0.0
    %v248 = vadd.f32 %v246, %v247
    %v249 = vsel %vm230, %v224, 0.0
    %v250 = vadd.f32 %v248, %v249
    %v251 = vsel %vm230, %v225, 0.0
    %v252 = vadd.f32 %v250, %v251
    %v253 = vsel %vm230, %v226, 0.0
    %v254 = vadd.f32 %v252, %v253
    %v255 = vsel %vm230, %v227, 0.0
    %v256 = vadd.f32 %v254, %v255
    %v257 = vsel %vm230, %v228, 0.0
    %v258 = vadd.f32 %v256, %v257
    %v259 = vsel %vm230, %v229, 0.0
    %v260 = vadd.f32 %v258, %v259
    %v261 = vsel %vm230, %v245, 0.0
    %v262 = vrot.slane %v261, 4
    %v263 = vadd.f32 %v261, %v262
    %v264 = vrot.slane %v263, 2
    %v265 = vadd.f32 %v263, %v264
    %v266 = vrot.slane %v265, 1
    %v267 = vadd.f32 %v265, %v266
    %v268 = vsel %vm230, %v260, 0.0
    %v269 = vrot.slane %v268, 4
    %v270 = vadd.f32 %v268, %v269
    %v271 = vrot.slane %v270, 2
    %v272 = vadd.f32 %v270, %v271
    %v273 = vrot.slane %v272, 1
    %v274 = vadd.f32 %v272, %v273
    %v275 = vld [vmem:[#allocation2] sm:$0x1]
    %v276 = vadd.f32 %v275, %v267
    %277 = vst [vmem:[#allocation2] sm:$0x1] %v276
    %v278 = vld [vmem:[#allocation3] sm:$0x1]
    %v279 = vadd.f32 %v278, %v274
    %280 = vst [vmem:[#allocation3] sm:$0x1] %v279
    // Predicated region
    $region26: #{tpu_custom_call.1} parent=1 // pred_check
      %p281 = pneg %p86
    $region27: #{tpu_custom_call.1} parent=1 // pred_check_branch
      %283 = sbr.rel (%p281) target = $region29
    $region28: #{tpu_custom_call.1} parent=1 // pred_region
      %v284 = vld [vmem:[#allocation2] sm:$0x1]
      %285 = vst [vmem:[#allocation9] sm:$0x1] %v284
      %v286 = vld [vmem:[#allocation3] sm:$0x1]
      %s287 = scalar_lea.vmem [#allocation9], 1
      %288 = vst [vmem:[%s287] sm:$0x1] %v286
    $region29: #{tpu_custom_call.1} parent=1 // pred_fallthru
      _
    // Predicated region
    $region30: #{tpu_custom_call.1} parent=1 // pred_check
      _
    $region31: #{tpu_custom_call.1} parent=1 // pred_check_branch
      %290 = sbr.rel (0) target = $region33
    $region32: #{tpu_custom_call.1} parent=1 // pred_region
      %s292 = ssub.s32 32, 32
      %293 = vsyncadd [#allocation6], %s292
      %s294 = sshll.u32 [#allocation9], 4
      %s295 = int_to_ptr.vmem [resolvable:$true] %s294
      %300 = dma.vmem_to_hbm [thread:$0]  %s295, 32, %s3, [#allocation6], 16, 16, 1
    $region33: #{tpu_custom_call.1} parent=1 // pred_fallthru
      _
    // Predicated region
    $region34: #{tpu_custom_call.1} parent=1 // pred_check
      _
    $region35: #{tpu_custom_call.1} parent=1 // pred_check_branch
      %302 = sbr.rel (0) target = $region37
    $region36: #{tpu_custom_call.1} parent=1 // pred_region
      %303 = dma.done [#allocation6], 32
    $region37: #{tpu_custom_call.1} parent=1 // pred_fallthru
      _
    %304 = vsyncpa [#allocation5], 1
    %305 = vsyncpa [#allocation8], 1
    %306 = vsyncpa [#allocation6], 1

</llo_original>
